<compile_context>
chip_gen: v7x
topology: tpu7x:2x2x1
jax: 0.10.0
libtpu: 0.0.40
codegen_flags: <defaults>
</compile_context>

<pallas_src>
import math
import functools

import jax
import jax.numpy as jnp
from jax.experimental import pallas as pl
from jax.experimental.pallas import tpu as pltpu

LN_EPS = 1e-6
_INV_SQRT2 = 0.7071067811865476
# Abramowitz & Stegun 7.1.26 erf coefficients.
_P = 0.3275911
_A1, _A2, _A3, _A4, _A5 = (0.254829592, -0.284496736, 1.421413741,
                           -1.453152027, 1.061405429)


def _round_up(x, m):
    return (x + m - 1) // m * m


def _erf_approx(z):
    """erf(z) to ~1.5e-7 abs error using exp + elementwise ops (VPU/EUP friendly)."""
    a = jnp.abs(z)
    t = 1.0 / (1.0 + _P * a)
    poly = ((((_A5 * t + _A4) * t + _A3) * t + _A2) * t + _A1) * t
    y = 1.0 - poly * jnp.exp(-a * a)
    return jnp.where(z < 0.0, -y, y)


def _gelu_erf(x):
    return x * 0.5 * (1.0 + _erf_approx(x * _INV_SQRT2))


# ----------------------------------------------------------------------------
# Fused PositionWise kernel
#   grid = (num_row_tiles, num_dff_tiles)
#   refs: x [tm,D], w1 [D,tf], b1 [1,tf], w2 [tf,D], b2 [1,D], gamma [1,D], beta [1,D]
#   out:  [tm,D];  scratch acc [tm,D] f32 (carried across the d_ff axis)
# ----------------------------------------------------------------------------
def _positionwise_kernel(x_ref, w1_ref, b1_ref, w2_ref, b2_ref, g_ref, be_ref,
                         o_ref, acc_ref, *, eps, inv_dm1):
    j = pl.program_id(1)

    @pl.when(j == 0)
    def _init():
        acc_ref[...] = jnp.zeros_like(acc_ref)

    x = x_ref[...]
    # First "conv1d" chunk + erf-GELU, kept in VMEM.
    h = jnp.dot(x, w1_ref[...], preferred_element_type=jnp.float32) + b1_ref[...]
    h = _gelu_erf(h)
    # Second "conv1d" chunk accumulated over d_ff tiles.
    acc_ref[...] += jnp.dot(h, w2_ref[...], preferred_element_type=jnp.float32)

    @pl.when(j == pl.num_programs(1) - 1)
    def _finalize():
        r = x + acc_ref[...] + b2_ref[...]                   # residual + output bias
        mu = jnp.mean(r, axis=-1, keepdims=True)
        d = r - mu
        var = jnp.sum(d * d, axis=-1, keepdims=True) * inv_dm1   # torch unbiased std
        sigma = jnp.maximum(jnp.sqrt(var), eps)                   # clamp(min=eps)
        inv_sigma = 1.0 / sigma                                   # tm divides only
        o_ref[...] = (d * inv_sigma) * g_ref[...] + be_ref[...]


def position_wise(x, params, *, tm=None, tf=None):
    """x: [B, L, D] float32 -> [B, L, D] float32."""
    B, L, D = x.shape
    w1 = params["w1"]          # [D, d_ff]   (= Conv1d(d_model, d_ff, 1).weight[:, :, 0].T)
    b1 = params["b1"]          # [d_ff]
    w2 = params["w2"]          # [d_ff, D]   (= Conv1d(d_ff, d_model, 1).weight[:, :, 0].T)
    b2 = params["b2"]          # [D]
    gamma = params["gamma"]    # [D]
    beta = params["beta"]      # [D]
    F = w1.shape[1]

    M = B * L
    x2d = x.reshape(M, D).astype(jnp.float32)

    # Row tile: multiple of 8; pad M up so the grid divides evenly.
    if tm is None:
        tm = int(min(256, _round_up(M, 8)))
    Mp = _round_up(M, tm)
    if Mp != M:
        x2d = jnp.pad(x2d, ((0, Mp - M), (0, 0)))

    # d_ff tile: 128-multiple chunk (<=512) when possible, else the full d_ff.
    # Keeps (x + 2x double-buffered W chunks + acc + out) well under v7x's 64 MiB VMEM.
    if tf is None:
        if F % 128 == 0:
            tf = 512
            while tf > 128 and F % tf:
                tf //= 2
            if F % tf:
                tf = F
        else:
            tf = F

    grid = (Mp // tm, F // tf)
    kern = functools.partial(_positionwise_kernel, eps=LN_EPS, inv_dm1=1.0 / (D - 1))

    out = pl.pallas_call(
        kern,
        out_shape=jax.ShapeDtypeStruct((Mp, D), jnp.float32),
        grid=grid,
        in_specs=[
            pl.BlockSpec((tm, D), lambda i, j: (i, 0)),   # x   (resident across j)
            pl.BlockSpec((D, tf), lambda i, j: (0, j)),   # w1 chunk
            pl.BlockSpec((1, tf), lambda i, j: (0, j)),   # b1 chunk
            pl.BlockSpec((tf, D), lambda i, j: (j, 0)),   # w2 chunk
            pl.BlockSpec((1, D), lambda i, j: (0, 0)),    # b2    (never re-DMAed)
            pl.BlockSpec((1, D), lambda i, j: (0, 0)),    # gamma (never re-DMAed)
            pl.BlockSpec((1, D), lambda i, j: (0, 0)),    # beta  (never re-DMAed)
        ],
        out_specs=pl.BlockSpec((tm, D), lambda i, j: (i, 0)),
        scratch_shapes=[pltpu.VMEM((tm, D), jnp.float32)],
        compiler_params=pltpu.CompilerParams(
            dimension_semantics=("parallel", "arbitrary")),
    )(x2d, w1, b1.reshape(1, F), w2, b2.reshape(1, D),
      gamma.reshape(1, D), beta.reshape(1, D))

    return out[:M].reshape(B, L, D)


# ----------------------------------------------------------------------------
# Pure-JAX reference (exact torch semantics: erf-GELU, unbiased-std LayerNorm)
# ----------------------------------------------------------------------------
def _position_wise_ref(x, p):
    B, L, D = x.shape
    xf = x.reshape(-1, D)
    h = xf @ p["w1"] + p["b1"]
    h = h * 0.5 * (1.0 + jax.scipy.special.erf(h / math.sqrt(2.0)))
    y = h @ p["w2"] + p["b2"]
    r = xf + y
    mu = jnp.mean(r, axis=-1, keepdims=True)
    sigma = jnp.maximum(jnp.std(r, axis=-1, keepdims=True, ddof=1), LN_EPS)
    out = (r - mu) / sigma * p["gamma"] + p["beta"]
    return out.reshape(B, L, D)


# ----------------------------------------------------------------------------
if __name__ == "__main__":
    # Small config consistent with the module: d_model=32, d_ff=64, batch=2, seq=8.
    B, L, D_MODEL, D_FF = 2, 8, 32, 64

    key = jax.random.PRNGKey(0)
    kx, k1, k2, k3, k4 = jax.random.split(key, 5)
    params = {
        "w1": (0.02 * jax.random.normal(k1, (D_MODEL, D_FF))).astype(jnp.float32),
        "b1": (0.02 * jax.random.normal(k2, (D_FF,))).astype(jnp.float32),
        "w2": (0.02 * jax.random.normal(k3, (D_FF, D_MODEL))).astype(jnp.float32),
        "b2": (0.02 * jax.random.normal(k4, (D_MODEL,))).astype(jnp.float32),
        "gamma": jnp.ones((D_MODEL,), jnp.float32),
        "beta": jnp.zeros((D_MODEL,), jnp.float32),
    }
    x = jax.random.normal(kx, (B, L, D_MODEL), dtype=jnp.float32)

    # tm=8 forces 2 row tiles even at this toy size so the pipelined/parallel
    # grid path is exercised; at real sizes the default (256-row tiles) applies.
    out = position_wise(x, params, tm=8)
    jax.block_until_ready(out)

    ref = _position_wise_ref(x, params)
    assert out.shape == (B, L, D_MODEL)
    assert bool(jnp.all(jnp.isfinite(out)))
    max_err = float(jnp.max(jnp.abs(out - ref)))
    assert max_err < 1e-4, f"max abs err vs exact-erf reference: {max_err}"
    print("KERNEL_OK")
</pallas_src>

<mosaic_0001>
module attributes {stable_mosaic.version = 11 : i64} {
  func.func @_positionwise_kernel(%arg0: i32, %arg1: i32, %arg2: memref<8x32xf32, #tpu.memory_space<vmem>>, %arg3: memref<32x64xf32, #tpu.memory_space<vmem>>, %arg4: memref<1x64xf32, #tpu.memory_space<vmem>>, %arg5: memref<64x32xf32, #tpu.memory_space<vmem>>, %arg6: memref<1x32xf32, #tpu.memory_space<vmem>>, %arg7: memref<1x32xf32, #tpu.memory_space<vmem>>, %arg8: memref<1x32xf32, #tpu.memory_space<vmem>>, %arg9: memref<8x32xf32, #tpu.memory_space<vmem>>, %arg10: memref<8x32xf32, #tpu.memory_space<vmem>>) attributes {dimension_semantics = [#tpu.dimension_semantics<parallel>, #tpu.dimension_semantics<arbitrary>], iteration_bounds = array<i64: 2, 1>, scalar_prefetch = 0 : i64, scratch_operands = 1 : i64, tpu.core_type = #tpu.core_type<tc>, window_params = [{transform_indices = @transform_0, window_bounds = array<i64: 8, 32>}, {transform_indices = @transform_1, window_bounds = array<i64: 32, 64>}, {transform_indices = @transform_2, window_bounds = array<i64: 1, 64>}, {transform_indices = @transform_3, window_bounds = array<i64: 64, 32>}, {pipeline_mode = #tpu.pipeline_mode<synchronous>, transform_indices = @transform_4, window_bounds = array<i64: 1, 32>}, {pipeline_mode = #tpu.pipeline_mode<synchronous>, transform_indices = @transform_5, window_bounds = array<i64: 1, 32>}, {pipeline_mode = #tpu.pipeline_mode<synchronous>, transform_indices = @transform_6, window_bounds = array<i64: 1, 32>}, {transform_indices = @transform_7, window_bounds = array<i64: 8, 32>}]} {
    %c0_i32 = arith.constant 0 : i32
    %0 = arith.cmpi eq, %arg1, %c0_i32 : i32
    %1 = arith.extui %0 : i1 to i32
    %c0_i32_0 = arith.constant 0 : i32
    %2 = arith.cmpi ne, %1, %c0_i32_0 : i32
    scf.if %2 {
      %cst_30 = arith.constant 0.000000e+00 : f32
      %57 = vector.broadcast %cst_30 : f32 to vector<8x32xf32>
      %c0_31 = arith.constant 0 : index
      %c0_32 = arith.constant 0 : index
      %58 = vector.load %arg10[%c0_31, %c0_32] : memref<8x32xf32, #tpu.memory_space<vmem>>, vector<8x32xf32>
      tpu.vector_store %arg10[%c0_31, %c0_32], %57 {strides = array<i32>} : memref<8x32xf32, #tpu.memory_space<vmem>>, vector<8x32xf32>,
    } else {
    }
    %c0 = arith.constant 0 : index
    %c0_1 = arith.constant 0 : index
    %3 = vector.load %arg2[%c0, %c0_1] : memref<8x32xf32, #tpu.memory_space<vmem>>, vector<8x32xf32>
    %c0_2 = arith.constant 0 : index
    %c0_3 = arith.constant 0 : index
    %4 = vector.load %arg3[%c0_2, %c0_3] : memref<32x64xf32, #tpu.memory_space<vmem>>, vector<32x64xf32>
    %cst = arith.constant dense<0.000000e+00> : vector<8x64xf32>
    %5 = tpu.matmul %3, %4, %cst {dimension_numbers = #tpu.dot_dimension_numbers<[1], [0], [0], [1], [0, 0, 1, 1], [], []>} : vector<8x32xf32>, vector<32x64xf32>, vector<8x64xf32> -> vector<8x64xf32>
    %c0_4 = arith.constant 0 : index
    %c0_5 = arith.constant 0 : index
    %6 = vector.load %arg4[%c0_4, %c0_5] : memref<1x64xf32, #tpu.memory_space<vmem>>, vector<1x64xf32>
    %7 = vector.broadcast %6 : vector<1x64xf32> to vector<8x64xf32>
    %8 = arith.addf %5, %7 : vector<8x64xf32>
    %cst_6 = arith.constant 5.000000e-01 : f32
    %9 = vector.broadcast %cst_6 : f32 to vector<8x64xf32>
    %10 = arith.mulf %8, %9 : vector<8x64xf32>
    %cst_7 = arith.constant 0.707106769 : f32
    %11 = vector.broadcast %cst_7 : f32 to vector<8x64xf32>
    %12 = arith.mulf %8, %11 : vector<8x64xf32>
    %13 = math.absf %12 : vector<8x64xf32>
    %cst_8 = arith.constant 0.327591091 : f32
    %14 = vector.broadcast %cst_8 : f32 to vector<8x64xf32>
    %15 = arith.mulf %14, %13 : vector<8x64xf32>
    %cst_9 = arith.constant 1.000000e+00 : f32
    %16 = vector.broadcast %cst_9 : f32 to vector<8x64xf32>
    %17 = arith.addf %16, %15 : vector<8x64xf32>
    %cst_10 = arith.constant 1.000000e+00 : f32
    %18 = vector.broadcast %cst_10 : f32 to vector<8x64xf32>
    %19 = arith.divf %18, %17 : vector<8x64xf32>
    %cst_11 = arith.constant 1.06140542 : f32
    %20 = vector.broadcast %cst_11 : f32 to vector<8x64xf32>
    %21 = arith.mulf %20, %19 : vector<8x64xf32>
    %cst_12 = arith.constant -1.45315206 : f32
    %22 = vector.broadcast %cst_12 : f32 to vector<8x64xf32>
    %23 = arith.addf %21, %22 : vector<8x64xf32>
    %24 = arith.mulf %23, %19 : vector<8x64xf32>
    %cst_13 = arith.constant 1.42141378 : f32
    %25 = vector.broadcast %cst_13 : f32 to vector<8x64xf32>
    %26 = arith.addf %24, %25 : vector<8x64xf32>
    %27 = arith.mulf %26, %19 : vector<8x64xf32>
    %cst_14 = arith.constant -0.284496725 : f32
    %28 = vector.broadcast %cst_14 : f32 to vector<8x64xf32>
    %29 = arith.addf %27, %28 : vector<8x64xf32>
    %30 = arith.mulf %29, %19 : vector<8x64xf32>
    %cst_15 = arith.constant 0.254829586 : f32
    %31 = vector.broadcast %cst_15 : f32 to vector<8x64xf32>
    %32 = arith.addf %30, %31 : vector<8x64xf32>
    %33 = arith.mulf %32, %19 : vector<8x64xf32>
    %cst_16 = arith.constant 0.000000e+00 : f32
    %34 = vector.broadcast %cst_16 : f32 to vector<8x64xf32>
    %35 = arith.subf %34, %13 : vector<8x64xf32>
    %36 = arith.mulf %35, %13 : vector<8x64xf32>
    %37 = math.exp %36 : vector<8x64xf32>
    %38 = arith.mulf %33, %37 : vector<8x64xf32>
    %cst_17 = arith.constant 1.000000e+00 : f32
    %39 = vector.broadcast %cst_17 : f32 to vector<8x64xf32>
    %40 = arith.subf %39, %38 : vector<8x64xf32>
    %cst_18 = arith.constant 0.000000e+00 : f32
    %41 = vector.broadcast %cst_18 : f32 to vector<8x64xf32>
    %42 = arith.cmpf olt, %12, %41 : vector<8x64xf32>
    %cst_19 = arith.constant 0.000000e+00 : f32
    %43 = vector.broadcast %cst_19 : f32 to vector<8x64xf32>
    %44 = arith.subf %43, %40 : vector<8x64xf32>
    %45 = arith.select %42, %44, %40 : vector<8x64xi1>, vector<8x64xf32>
    %cst_20 = arith.constant 1.000000e+00 : f32
    %46 = vector.broadcast %cst_20 : f32 to vector<8x64xf32>
    %47 = arith.addf %46, %45 : vector<8x64xf32>
    %48 = arith.mulf %10, %47 : vector<8x64xf32>
    %c0_21 = arith.constant 0 : index
    %c0_22 = arith.constant 0 : index
    %49 = vector.load %arg10[%c0_21, %c0_22] : memref<8x32xf32, #tpu.memory_space<vmem>>, vector<8x32xf32>
    %c0_23 = arith.constant 0 : index
    %c0_24 = arith.constant 0 : index
    %50 = vector.load %arg5[%c0_23, %c0_24] : memref<64x32xf32, #tpu.memory_space<vmem>>, vector<64x32xf32>
    %cst_25 = arith.constant dense<0.000000e+00> : vector<8x32xf32>
    %51 = tpu.matmul %48, %50, %cst_25 {dimension_numbers = #tpu.dot_dimension_numbers<[1], [0], [0], [1], [0, 0, 1, 1], [], []>} : vector<8x64xf32>, vector<64x32xf32>, vector<8x32xf32> -> vector<8x32xf32>
    %52 = arith.addf %49, %51 : vector<8x32xf32>
    %c0_26 = arith.constant 0 : index
    %c0_27 = arith.constant 0 : index
    %53 = vector.load %arg10[%c0_26, %c0_27] : memref<8x32xf32, #tpu.memory_space<vmem>>, vector<8x32xf32>
    tpu.vector_store %arg10[%c0_26, %c0_27], %52 {strides = array<i32>} : memref<8x32xf32, #tpu.memory_space<vmem>>, vector<8x32xf32>,
    %c0_i32_28 = arith.constant 0 : i32
    %54 = arith.cmpi eq, %arg1, %c0_i32_28 : i32
    %55 = arith.extui %54 : i1 to i32
    %c0_i32_29 = arith.constant 0 : i32
    %56 = arith.cmpi ne, %55, %c0_i32_29 : i32
    scf.if %56 {
      %c0_30 = arith.constant 0 : index
      %c0_31 = arith.constant 0 : index
      %57 = vector.load %arg10[%c0_30, %c0_31] : memref<8x32xf32, #tpu.memory_space<vmem>>, vector<8x32xf32>
      %58 = arith.addf %3, %57 : vector<8x32xf32>
      %c0_32 = arith.constant 0 : index
      %c0_33 = arith.constant 0 : index
      %59 = vector.load %arg6[%c0_32, %c0_33] : memref<1x32xf32, #tpu.memory_space<vmem>>, vector<1x32xf32>
      %60 = vector.broadcast %59 : vector<1x32xf32> to vector<8x32xf32>
      %61 = arith.addf %58, %60 : vector<8x32xf32>
      %cst_34 = arith.constant dense<0.000000e+00> : vector<8xf32>
      %62 = vector.multi_reduction <add>, %61, %cst_34 [1] : vector<8x32xf32> to vector<8xf32>
      %63 = vector.shape_cast %62 : vector<8xf32> to vector<8x1xf32>
      %cst_35 = arith.constant 3.200000e+01 : f32
      %64 = vector.broadcast %cst_35 : f32 to vector<8x1xf32>
      %65 = arith.divf %63, %64 : vector<8x1xf32>
      %66 = vector.broadcast %65 : vector<8x1xf32> to vector<8x32xf32>
      %67 = arith.subf %61, %66 : vector<8x32xf32>
      %68 = arith.mulf %67, %67 : vector<8x32xf32>
      %cst_36 = arith.constant dense<0.000000e+00> : vector<8xf32>
      %69 = vector.multi_reduction <add>, %68, %cst_36 [1] : vector<8x32xf32> to vector<8xf32>
      %70 = vector.shape_cast %69 : vector<8xf32> to vector<8x1xf32>
      %cst_37 = arith.constant 0.0322580636 : f32
      %71 = vector.broadcast %cst_37 : f32 to vector<8x1xf32>
      %72 = arith.mulf %70, %71 : vector<8x1xf32>
      %73 = math.sqrt %72 : vector<8x1xf32>
      %cst_38 = arith.constant 9.99999997E-7 : f32
      %74 = vector.broadcast %cst_38 : f32 to vector<8x1xf32>
      %75 = arith.maximumf %73, %74 : vector<8x1xf32>
      %cst_39 = arith.constant 1.000000e+00 : f32
      %76 = vector.broadcast %cst_39 : f32 to vector<8x1xf32>
      %77 = arith.divf %76, %75 : vector<8x1xf32>
      %78 = vector.broadcast %77 : vector<8x1xf32> to vector<8x32xf32>
      %79 = arith.mulf %67, %78 : vector<8x32xf32>
      %c0_40 = arith.constant 0 : index
      %c0_41 = arith.constant 0 : index
      %80 = vector.load %arg7[%c0_40, %c0_41] : memref<1x32xf32, #tpu.memory_space<vmem>>, vector<1x32xf32>
      %81 = vector.broadcast %80 : vector<1x32xf32> to vector<8x32xf32>
      %82 = arith.mulf %79, %81 : vector<8x32xf32>
      %c0_42 = arith.constant 0 : index
      %c0_43 = arith.constant 0 : index
      %83 = vector.load %arg8[%c0_42, %c0_43] : memref<1x32xf32, #tpu.memory_space<vmem>>, vector<1x32xf32>
      %84 = vector.broadcast %83 : vector<1x32xf32> to vector<8x32xf32>
      %85 = arith.addf %82, %84 : vector<8x32xf32>
      %c0_44 = arith.constant 0 : index
      %c0_45 = arith.constant 0 : index
      %86 = vector.load %arg9[%c0_44, %c0_45] : memref<8x32xf32, #tpu.memory_space<vmem>>, vector<8x32xf32>
      tpu.vector_store %arg9[%c0_44, %c0_45], %85 {strides = array<i32>} : memref<8x32xf32, #tpu.memory_space<vmem>>, vector<8x32xf32>,
    } else {
    }
    return
  }
  func.func @transform_0(%arg0: i32, %arg1: i32) -> (i32, i32) {
    %c0_i32 = arith.constant 0 : i32
    %c0_i32_0 = arith.constant 0 : i32
    return %arg0, %c0_i32 : i32, i32
  }
  func.func @transform_1(%arg0: i32, %arg1: i32) -> (i32, i32) {
    %c0_i32 = arith.constant 0 : i32
    %c0_i32_0 = arith.constant 0 : i32
    return %c0_i32, %arg1 : i32, i32
  }
  func.func @transform_2(%arg0: i32, %arg1: i32) -> (i32, i32) {
    %c0_i32 = arith.constant 0 : i32
    %c0_i32_0 = arith.constant 0 : i32
    return %c0_i32, %arg1 : i32, i32
  }
  func.func @transform_3(%arg0: i32, %arg1: i32) -> (i32, i32) {
    %c0_i32 = arith.constant 0 : i32
    %c0_i32_0 = arith.constant 0 : i32
    return %arg1, %c0_i32 : i32, i32
  }
  func.func @transform_4(%arg0: i32, %arg1: i32) -> (i32, i32) {
    %c0_i32 = arith.constant 0 : i32
    %c0_i32_0 = arith.constant 0 : i32
    %c0_i32_1 = arith.constant 0 : i32
    return %c0_i32, %c0_i32_0 : i32, i32
  }
  func.func @transform_5(%arg0: i32, %arg1: i32) -> (i32, i32) {
    %c0_i32 = arith.constant 0 : i32
    %c0_i32_0 = arith.constant 0 : i32
    %c0_i32_1 = arith.constant 0 : i32
    return %c0_i32, %c0_i32_0 : i32, i32
  }
  func.func @transform_6(%arg0: i32, %arg1: i32) -> (i32, i32) {
    %c0_i32 = arith.constant 0 : i32
    %c0_i32_0 = arith.constant 0 : i32
    %c0_i32_1 = arith.constant 0 : i32
    return %c0_i32, %c0_i32_0 : i32, i32
  }
  func.func @transform_7(%arg0: i32, %arg1: i32) -> (i32, i32) {
    %c0_i32 = arith.constant 0 : i32
    %c0_i32_0 = arith.constant 0 : i32
    return %arg0, %c0_i32 : i32, i32
  }
}

</mosaic_0001>

<llo_original>
// kernel: tpu_custom_call.1
$region0: #{tpu_custom_call.1}
  #allocation0 [shape = 'u32[]', space=smem, size = 0x4, offset = 0x4, fixed_abs, tag = 'smem constant byte address 0x4 - core index']
  #allocation1 [shape = 'u32[144,128]{1,0:T(1,128)}', space=vmem, size = 0x12000, scoped, tag = 'internal scratch']
  #allocation2 [shape = 'f32[8,32]{1,0:T(8,128)}', space=vmem, size = 0x1000, scoped, tag = 'scratch operand']
  %s0 = inlined_call_operand.vmem [shape: f32[16,32], index: 0, kind: input, shape index: {}]
  %s1 = inlined_call_operand.vmem [shape: f32[32,64], index: 1, kind: input, shape index: {}]
  %s2 = inlined_call_operand.vmem [shape: f32[1,64], index: 2, kind: input, shape index: {}]
  %s3 = inlined_call_operand.vmem [shape: f32[64,32], index: 3, kind: input, shape index: {}]
  %s4 = inlined_call_operand.vmem [shape: f32[1,32], index: 4, kind: input, shape index: {}]
  %s5 = inlined_call_operand.vmem [shape: f32[1,32], index: 5, kind: input, shape index: {}]
  %s6 = inlined_call_operand.vmem [shape: f32[1,32], index: 6, kind: input, shape index: {}]
  %s7 = inlined_call_operand.hbm [shape: f32[16,32], index: 7, kind: output, shape index: {}]
  %s8 = sld [smem:[#allocation0]]
  $region69: #{tpu_custom_call.1} parent=0
    _
  %s10 = ssub.s32 1, %s8
  %s11 = scalar_select 0, %s10, %s8
  $region1: #{tpu_custom_call.1} parent=0
    #allocation3 [shape = 'u8[8192]{0}', space=vmem, size = 0x2000, scoped, tag = 'output window, operand 0']
    #allocation4 [shape = 's32[2]{0}', space=sflag, size = 0x8, scoped, tag = 'scoped memory for tpu_custom_call.1']
    %12 = vsyncpa [#allocation4], 0
    %s13 = scalar_lea.sflag [#allocation4], 1
    %14 = vsyncpa %s13, 0
    loop: start=0, step=1, limit=4
    $region2: #{tpu_custom_call.1} parent=1 // loop_pre_header
      _
    $region3: #{tpu_custom_call.1} parent=1 // loop_header
      %s16 = sphi 0, %s20
      %p17 = scmp.ge.s32.totalorder %s16, 4
      %s23 = sphi 0, %s35
      %s24 = sphi 0, %s31
      %s25 = sphi 0, %s23
      %s26 = sphi 0, %s24
      %s27 = sphi 0, %s25
      %s28 = sphi 0, %s26
      %s38 = sphi 0, %s40
      %s41 = sphi 0, %s38
      %s42 = sphi 0, %s41
      %s58 = sphi 0, %s42
      %s64 = sphi 0, %s66
      %s67 = sphi 0, %s64
      %s68 = sphi 0, %s67
      %s84 = sphi 0, %s68
      %s90 = sphi 0, %s92
      %s93 = sphi 0, %s90
      %s94 = sphi 0, %s93
      %s110 = sphi 0, %s94
      %s116 = sphi 0, %s118
      %s119 = sphi 0, %s116
      %s120 = sphi 0, %s119
      %s136 = sphi 0, %s120
      %s140 = sphi 0, %s140
      %s142 = sphi 0, %s140
      %s143 = sphi 0, %s142
      %s157 = sphi 0, %s143
      %s161 = sphi 0, %s161
      %s163 = sphi 0, %s161
      %s164 = sphi 0, %s163
      %s178 = sphi 0, %s164
      %s182 = sphi 0, %s182
      %s184 = sphi 0, %s182
      %s185 = sphi 0, %s184
      %s199 = sphi 0, %s185
      %s205 = sphi 0, %s207
      %s208 = sphi 0, %s205
      %s209 = sphi 0, %s208
      %s225 = sphi 0, %s209
    $region4: #{tpu_custom_call.1} parent=1 // loop_header_branch
      %19 = sbr.rel (%p17) target = $region8
    $region5: #{tpu_custom_call.1} parent=1 // loop_body
      %s21 = ssub.s32 %s16, 1
      %s22 = ssub.s32 %s16, 2
      %s29 = sadd.s32 1, %s24
      %p30 = scmp.ge.s32.totalorder %s29, 1
      %s31 = scalar_select %p30, 0, %s29
      %s32 = sadd.s32 1, %s23
      %s33 = scalar_select %p30, %s32, %s23
      %p34 = scmp.ge.s32.totalorder %s33, 2
      %s35 = scalar_select %p34, 0, %s33
      %s36 = ssub.s32 %s23, %s35
      %p37 = scmp.eq.s32.totalorder %s36, 0
      %s39 = sadd.s32 %s38, 1
      %s40 = scalar_select %p37, %s38, %s39
      %p43 = pneg %p37
      %p44 = scmp.eq.s32.totalorder %s16, 1
      %p45 = por %p43, %p44
      %p46 = scmp.ne.s32.totalorder %s38, %s41
      %p47 = scmp.eq.s32.totalorder %s16, 0
      %p48 = por %p46, %p47
      %p49 = scmp.ne.s32.totalorder %s38, %s41
      %p50 = scmp.eq.s32.totalorder %s21, 1
      %p51 = por %p49, %p50
      %p52 = scmp.ne.s32.totalorder %s41, %s42
      %p53 = scmp.eq.s32.totalorder %s21, 0
      %p54 = por %p52, %p53
      %p55 = scmp.ne.s32.totalorder %s41, %s42
      %p56 = scmp.eq.s32.totalorder %s22, 1
      %p57 = por %p55, %p56
      %p59 = scmp.ne.s32.totalorder %s42, %s58
      %p60 = scmp.eq.s32.totalorder %s22, 0
      %p61 = por %p59, %p60
      %s62 = ssub.s32 %s24, %s31
      %p63 = scmp.eq.s32.totalorder %s62, 0
      %s65 = sadd.s32 %s64, 1
      %s66 = scalar_select %p63, %s64, %s65
      %p69 = pneg %p63
      %p70 = scmp.eq.s32.totalorder %s16, 1
      %p71 = por %p69, %p70
      %p72 = scmp.ne.s32.totalorder %s64, %s67
      %p73 = scmp.eq.s32.totalorder %s16, 0
      %p74 = por %p72, %p73
      %p75 = scmp.ne.s32.totalorder %s64, %s67
      %p76 = scmp.eq.s32.totalorder %s21, 1
      %p77 = por %p75, %p76
      %p78 = scmp.ne.s32.totalorder %s67, %s68
      %p79 = scmp.eq.s32.totalorder %s21, 0
      %p80 = por %p78, %p79
      %p81 = scmp.ne.s32.totalorder %s67, %s68
      %p82 = scmp.eq.s32.totalorder %s22, 1
      %p83 = por %p81, %p82
      %p85 = scmp.ne.s32.totalorder %s68, %s84
      %p86 = scmp.eq.s32.totalorder %s22, 0
      %p87 = por %p85, %p86
      %s88 = ssub.s32 %s24, %s31
      %p89 = scmp.eq.s32.totalorder %s88, 0
      %s91 = sadd.s32 %s90, 1
      %s92 = scalar_select %p89, %s90, %s91
      %p95 = pneg %p89
      %p96 = scmp.eq.s32.totalorder %s16, 1
      %p97 = por %p95, %p96
      %p98 = scmp.ne.s32.totalorder %s90, %s93
      %p99 = scmp.eq.s32.totalorder %s16, 0
      %p100 = por %p98, %p99
      %p101 = scmp.ne.s32.totalorder %s90, %s93
      %p102 = scmp.eq.s32.totalorder %s21, 1
      %p103 = por %p101, %p102
      %p104 = scmp.ne.s32.totalorder %s93, %s94
      %p105 = scmp.eq.s32.totalorder %s21, 0
      %p106 = por %p104, %p105
      %p107 = scmp.ne.s32.totalorder %s93, %s94
      %p108 = scmp.eq.s32.totalorder %s22, 1
      %p109 = por %p107, %p108
      %p111 = scmp.ne.s32.totalorder %s94, %s110
      %p112 = scmp.eq.s32.totalorder %s22, 0
      %p113 = por %p111, %p112
      %s114 = ssub.s32 %s24, %s31
      %p115 = scmp.eq.s32.totalorder %s114, 0
      %s117 = sadd.s32 %s116, 1
      %s118 = scalar_select %p115, %s116, %s117
      %p121 = pneg %p115
      %p122 = scmp.eq.s32.totalorder %s16, 1
      %p123 = por %p121, %p122
      %p124 = scmp.ne.s32.totalorder %s116, %s119
      %p125 = scmp.eq.s32.totalorder %s16, 0
      %p126 = por %p124, %p125
      %p127 = scmp.ne.s32.totalorder %s116, %s119
      %p128 = scmp.eq.s32.totalorder %s21, 1
      %p129 = por %p127, %p128
      %p130 = scmp.ne.s32.totalorder %s119, %s120
      %p131 = scmp.eq.s32.totalorder %s21, 0
      %p132 = por %p130, %p131
      %p133 = scmp.ne.s32.totalorder %s119, %s120
      %p134 = scmp.eq.s32.totalorder %s22, 1
      %p135 = por %p133, %p134
      %p137 = scmp.ne.s32.totalorder %s120, %s136
      %p138 = scmp.eq.s32.totalorder %s22, 0
      %p139 = por %p137, %p138
      %s141 = sadd.s32 %s140, 1
      %p144 = scmp.eq.s32.totalorder %s16, 1
      %p145 = scmp.ne.s32.totalorder %s140, %s142
      %p146 = scmp.eq.s32.totalorder %s16, 0
      %p147 = por %p145, %p146
      %p148 = scmp.ne.s32.totalorder %s140, %s142
      %p149 = scmp.eq.s32.totalorder %s21, 1
      %p150 = por %p148, %p149
      %p151 = scmp.ne.s32.totalorder %s142, %s143
      %p152 = scmp.eq.s32.totalorder %s21, 0
      %p153 = por %p151, %p152
      %p154 = scmp.ne.s32.totalorder %s142, %s143
      %p155 = scmp.eq.s32.totalorder %s22, 1
      %p156 = por %p154, %p155
      %p158 = scmp.ne.s32.totalorder %s143, %s157
      %p159 = scmp.eq.s32.totalorder %s22, 0
      %p160 = por %p158, %p159
      %s162 = sadd.s32 %s161, 1
      %p165 = scmp.eq.s32.totalorder %s16, 1
      %p166 = scmp.ne.s32.totalorder %s161, %s163
      %p167 = scmp.eq.s32.totalorder %s16, 0
      %p168 = por %p166, %p167
      %p169 = scmp.ne.s32.totalorder %s161, %s163
      %p170 = scmp.eq.s32.totalorder %s21, 1
      %p171 = por %p169, %p170
      %p172 = scmp.ne.s32.totalorder %s163, %s164
      %p173 = scmp.eq.s32.totalorder %s21, 0
      %p174 = por %p172, %p173
      %p175 = scmp.ne.s32.totalorder %s163, %s164
      %p176 = scmp.eq.s32.totalorder %s22, 1
      %p177 = por %p175, %p176
      %p179 = scmp.ne.s32.totalorder %s164, %s178
      %p180 = scmp.eq.s32.totalorder %s22, 0
      %p181 = por %p179, %p180
      %s183 = sadd.s32 %s182, 1
      %p186 = scmp.eq.s32.totalorder %s16, 1
      %p187 = scmp.ne.s32.totalorder %s182, %s184
      %p188 = scmp.eq.s32.totalorder %s16, 0
      %p189 = por %p187, %p188
      %p190 = scmp.ne.s32.totalorder %s182, %s184
      %p191 = scmp.eq.s32.totalorder %s21, 1
      %p192 = por %p190, %p191
      %p193 = scmp.ne.s32.totalorder %s184, %s185
      %p194 = scmp.eq.s32.totalorder %s21, 0
      %p195 = por %p193, %p194
      %p196 = scmp.ne.s32.totalorder %s184, %s185
      %p197 = scmp.eq.s32.totalorder %s22, 1
      %p198 = por %p196, %p197
      %p200 = scmp.ne.s32.totalorder %s185, %s199
      %p201 = scmp.eq.s32.totalorder %s22, 0
      %p202 = por %p200, %p201
      %s203 = ssub.s32 %s23, %s35
      %p204 = scmp.eq.s32.totalorder %s203, 0
      %s206 = sadd.s32 %s205, 1
      %s207 = scalar_select %p204, %s205, %s206
      %p210 = pneg %p204
      %p211 = scmp.eq.s32.totalorder %s16, 1
      %p212 = por %p210, %p211
      %p213 = scmp.ne.s32.totalorder %s205, %s208
      %p214 = scmp.eq.s32.totalorder %s16, 0
      %p215 = por %p213, %p214
      %p216 = scmp.ne.s32.totalorder %s205, %s208
      %p217 = scmp.eq.s32.totalorder %s21, 1
      %p218 = por %p216, %p217
      %p219 = scmp.ne.s32.totalorder %s208, %s209
      %p220 = scmp.eq.s32.totalorder %s21, 0
      %p221 = por %p219, %p220
      %p222 = scmp.ne.s32.totalorder %s208, %s209
      %p223 = scmp.eq.s32.totalorder %s22, 1
      %p224 = por %p222, %p223
      %p226 = scmp.ne.s32.totalorder %s209, %s225
      %p227 = scmp.eq.s32.totalorder %s22, 0
      %p228 = por %p226, %p227
      %p229 = scmp.le.s32.totalorder 1, %s16
      %p230 = scmp.lt.s32.totalorder %s16, 3
      %p231 = pnand %p229, %p230
      %p232 = pneg %p231
      // Predicated region
      $region9: #{tpu_custom_call.1} parent=5 // pred_check
        _
      $region10: #{tpu_custom_call.1} parent=5 // pred_check_branch
        %234 = sbr.rel (%p231) target = $region12
      $region11: #{tpu_custom_call.1} parent=5 // pred_region
        %s235 = ssub.s32 %s16, 1
        // Predicated region
        $region13: #{tpu_custom_call.1} parent=11 // pred_check
          %p236 = pneg %p80
        $region14: #{tpu_custom_call.1} parent=11 // pred_check_branch
          %238 = sbr.rel (%p236) target = $region16
        $region15: #{tpu_custom_call.1} parent=11 // pred_region
          %p239 = scmp.lt.s32.totalorder %s26, 0
          %s240 = scalar_select %p239, %s26, 0
          %s241 = smul.addr %s240, 8
          %s242 = scalar_lea.vmem %s1, %s241
        $region16: #{tpu_custom_call.1} parent=11 // pred_fallthru
          _
        // Predicated region
        $region17: #{tpu_custom_call.1} parent=11 // pred_check
          %p243 = pneg %p106
        $region18: #{tpu_custom_call.1} parent=11 // pred_check_branch
          %245 = sbr.rel (%p243) target = $region20
        $region19: #{tpu_custom_call.1} parent=11 // pred_region
          %p246 = scmp.lt.s32.totalorder %s26, 0
          %s247 = scalar_select %p246, %s26, 0
          %s248 = scalar_lea.vmem %s2, %s247
        $region20: #{tpu_custom_call.1} parent=11 // pred_fallthru
          _
        // Predicated region
        $region21: #{tpu_custom_call.1} parent=11 // pred_check
          %p249 = pneg %p132
        $region22: #{tpu_custom_call.1} parent=11 // pred_check_branch
          %251 = sbr.rel (%p249) target = $region24
        $region23: #{tpu_custom_call.1} parent=11 // pred_region
          %s252 = smul.u32 8, %s26
          %p253 = scmp.lt.s32.totalorder %s252, 7
          %s254 = scalar_select %p253, %s252, 7
          %s255 = smul.addr %s254, 8
          %s256 = scalar_lea.vmem %s3, %s255
          %s257 = smul.u32 8, %s26
        $region24: #{tpu_custom_call.1} parent=11 // pred_fallthru
          _
        // Predicated region
        $region25: #{tpu_custom_call.1} parent=11 // pred_check
          %p258 = pneg %p153
        $region26: #{tpu_custom_call.1} parent=11 // pred_check_branch
          %260 = sbr.rel (%p258) target = $region28
        $region27: #{tpu_custom_call.1} parent=11 // pred_region
          _
        $region28: #{tpu_custom_call.1} parent=11 // pred_fallthru
          _
        // Predicated region
        $region29: #{tpu_custom_call.1} parent=11 // pred_check
          %p261 = pneg %p174
        $region30: #{tpu_custom_call.1} parent=11 // pred_check_branch
          %263 = sbr.rel (%p261) target = $region32
        $region31: #{tpu_custom_call.1} parent=11 // pred_region
          _
        $region32: #{tpu_custom_call.1} parent=11 // pred_fallthru
          _
        // Predicated region
        $region33: #{tpu_custom_call.1} parent=11 // pred_check
          %p264 = pneg %p195
        $region34: #{tpu_custom_call.1} parent=11 // pred_check_branch
          %266 = sbr.rel (%p264) target = $region36
        $region35: #{tpu_custom_call.1} parent=11 // pred_region
          _
        $region36: #{tpu_custom_call.1} parent=11 // pred_fallthru
          _
      $region12: #{tpu_custom_call.1} parent=5 // pred_fallthru
        _
      %p267 = scmp.lt.s32.totalorder %s16, 2
      // Predicated region
      $region37: #{tpu_custom_call.1} parent=5 // pred_check
        %p268 = pneg %p267
      $region38: #{tpu_custom_call.1} parent=5 // pred_check_branch
        %270 = sbr.rel (%p268) target = $region40
      $region39: #{tpu_custom_call.1} parent=5 // pred_region
        // Predicated region
        $region41: #{tpu_custom_call.1} parent=39 // pred_check
          %p271 = pneg %p48
        $region42: #{tpu_custom_call.1} parent=39 // pred_check_branch
          %273 = sbr.rel (%p271) target = $region44
        $region43: #{tpu_custom_call.1} parent=39 // pred_region
          %p274 = scmp.lt.s32.totalorder %s23, 1
          %s275 = scalar_select %p274, %s23, 1
          %s276 = smul.addr %s275, 8
          %s277 = scalar_lea.vmem %s0, %s276
        $region44: #{tpu_custom_call.1} parent=39 // pred_fallthru
          _
      $region40: #{tpu_custom_call.1} parent=5 // pred_fallthru
        _
      %p278 = scmp.le.s32.totalorder 1, %s16
      %p279 = scmp.lt.s32.totalorder %s16, 3
      %p280 = pnand %p278, %p279
      %p281 = pneg %p280
      // Predicated region
      $region45: #{tpu_custom_call.1} parent=5 // pred_check
        _
      $region46: #{tpu_custom_call.1} parent=5 // pred_check_branch
        %283 = sbr.rel (%p280) target = $region48
      $region47: #{tpu_custom_call.1} parent=5 // pred_region
        %s284 = ssub.s32 %s16, 1
        %p285 = scmp.lt.s32.totalorder %s25, 1
        %s286 = scalar_select %p285, %s25, 1
        %s287 = smul.addr %s286, 8
        %s288 = scalar_lea.vmem %s0, %s287
        %p289 = pneg %p54
        %p290 = pneg %p51
        %p291 = scmp.lt.s32.totalorder %s26, 0
        %s292 = scalar_select %p291, %s26, 0
        %s293 = smul.addr %s292, 8
        %s294 = scalar_lea.vmem %s1, %s293
        %p295 = pneg %p80
        %p296 = pneg %p77
        %p297 = scmp.lt.s32.totalorder %s26, 0
        %s298 = scalar_select %p297, %s26, 0
        %s299 = scalar_lea.vmem %s2, %s298
        %p300 = pneg %p106
        %p301 = pneg %p103
        %s302 = smul.u32 8, %s26
        %p303 = scmp.lt.s32.totalorder %s302, 7
        %s304 = scalar_select %p303, %s302, 7
        %s305 = smul.addr %s304, 8
        %s306 = scalar_lea.vmem %s3, %s305
        %p307 = pneg %p132
        %p308 = pneg %p129
        %p309 = pneg %p153
        %p310 = pneg %p150
        %p311 = pneg %p174
        %p312 = pneg %p171
        %p313 = pneg %p195
        %p314 = pneg %p192
        %p315 = pneg %p221
        %p316 = pneg %p218
        %s317 = sand.u32 %s208, 1
        %s318 = scalar_lea.sflag [#allocation4], %s317
        %s319 = sand.u32 %s208, 1
        %s320 = smul.addr %s319, 8
        %s321 = scalar_lea.vmem [#allocation3], %s320
        %p322 = scmp.lt.s32.totalorder %s25, 1
        %s323 = scalar_select %p322, %s25, 1
        %s324 = smul.addr %s323, 8
        %s325 = scalar_lea.vmem %s0, %s324
        %p326 = scmp.lt.s32.totalorder %s26, 0
        %s327 = scalar_select %p326, %s26, 0
        %s328 = smul.addr %s327, 8
        %s329 = scalar_lea.vmem %s1, %s328
        %p330 = scmp.lt.s32.totalorder %s26, 0
        %s331 = scalar_select %p330, %s26, 0
        %s332 = scalar_lea.vmem %s2, %s331
        %s333 = smul.u32 8, %s26
        %p334 = scmp.lt.s32.totalorder %s333, 7
        %s335 = scalar_select %p334, %s333, 7
        %s336 = smul.addr %s335, 8
        %s337 = scalar_lea.vmem %s3, %s336
        %s338 = smul.u32 8, %s26
        %p339 = scmp.eq.s32.totalorder %s26, 0
        // Predicated region
        $region49: #{tpu_custom_call.1} parent=47 // pred_check
          %p340 = pneg %p339
        $region50: #{tpu_custom_call.1} parent=47 // pred_check_branch
          %342 = sbr.rel (%p340) target = $region52
        $region51: #{tpu_custom_call.1} parent=47 // pred_region
          %vm343 = vcmask 261120
          %344 = vst.msk [vmem:[#allocation2] sm:$0xff] %vm343, 0.0
        $region52: #{tpu_custom_call.1} parent=47 // pred_fallthru
          _
        %v345 = vld [vmem:[%s325] sm:$0xff]
        %v346 = vld [vmem:[%s329] sm:$0xff]
        %v347 = vld [vmem:[%s329 + $0x8] sm:$0xff]
        %v348 = vld [vmem:[%s329 + $0x10] sm:$0xff]
        %v349 = vld [vmem:[%s329 + $0x18] sm:$0xff]
        %v350 = vld [vmem:[%s332] sm:$0x1]
        %v352 = vlaneseq
        %v353 = vshrl.u32 %v352, 7
        %v354 = vsub.s32 0, %v353
        %v355 = vrot.slane %v350, %v354
        %vm357 = vcmask 261120
        %v359 = vsel %vm357, %v345, 0
        %361 = vmatprep.subr.mxu0 0.0
        %362 = vmatpush1.msra.mxu0 %v346
        %363 = vmatprep.subr.mxu0 0.0
        %364 = vmatpush1.msra.mxu0 %v347
        %365 = vmatprep.subr.mxu0 0.0
        %366 = vmatpush1.msra.mxu0 %v348
        %367 = vmatprep.subr.mxu0 0.0
        %368 = vmatpush1.msra.mxu0 %v349
        %369 = vmatprep.subr.mxu0 0.0
        %370 = vmatpush1.msra.mxu0 0.0
        %371 = vmatprep.subr.mxu0 0.0
        %372 = vmatpush1.msra.mxu0 0.0
        %373 = vmatprep.subr.mxu0 0.0
        %374 = vmatpush1.msra.mxu0 0.0
        %375 = vmatprep.subr.mxu0 0.0
        %376 = vmatpush1.msra.mxu0 0.0
        %377 = vmatprep.subr.mxu0 0.0
        %378 = vmatpush1.msra.mxu0 0.0
        %379 = vmatprep.subr.mxu0 0.0
        %380 = vmatpush1.msra.mxu0 0.0
        %381 = vmatprep.subr.mxu0 0.0
        %382 = vmatpush1.msra.mxu0 0.0
        %383 = vmatprep.subr.mxu0 0.0
        %384 = vmatpush1.msra.mxu0 0.0
        %385 = vmatprep.subr.mxu0 0.0
        %386 = vmatpush1.msra.mxu0 0.0
        %387 = vmatprep.subr.mxu0 0.0
        %388 = vmatpush1.msra.mxu0 0.0
        %389 = vmatprep.subr.mxu0 0.0
        %390 = vmatpush1.msra.mxu0 0.0
        %391 = vmatprep.subr.mxu0 0.0
        %392 = vmatpush1.msra.mxu0 0.0
        %393 = vmatprep.subr.mxu0 0.0
        %394 = vmatpush1.msra.mxu0 0.0
        %395 = vmatprep.subr.mxu0 0.0
        %396 = vmatpush1.msra.mxu0 0.0
        %397 = vmatprep.subr.mxu0 0.0
        %398 = vmatpush1.msra.mxu0 0.0
        %399 = vmatprep.subr.mxu0 0.0
        %400 = vmatpush1.msra.mxu0 0.0
        %401 = vmatprep.subr.mxu0 0.0
        %402 = vmatpush1.msra.mxu0 0.0
        %403 = vmatprep.subr.mxu0 0.0
        %404 = vmatpush1.msra.mxu0 0.0
        %405 = vmatprep.subr.mxu0 0.0
        %406 = vmatpush1.msra.mxu0 0.0
        %407 = vmatprep.subr.mxu0 0.0
        %408 = vmatpush1.msra.mxu0 0.0
        %409 = vmatprep.subr.mxu0 0.0
        %410 = vmatpush1.msra.mxu0 0.0
        %411 = vmatprep.subr.mxu0 0.0
        %412 = vmatpush1.msra.mxu0 0.0
        %413 = vmatprep.subr.mxu0 0.0
        %414 = vmatpush1.msra.mxu0 0.0
        %415 = vmatprep.subr.mxu0 0.0
        %416 = vmatpush1.msra.mxu0 0.0
        %417 = vmatprep.subr.mxu0 0.0
        %418 = vmatpush1.msra.mxu0 0.0
        %419 = vmatprep.subr.mxu0 0.0
        %420 = vmatpush1.msra.mxu0 0.0
        %421 = vmatprep.subr.mxu0 0.0
        %422 = vmatpush1.msra.mxu0 0.0
        %423 = vmatprep.subr.mxu0 0.0
        %424 = vmatpush1.msra.mxu0 0.0
        %425 = vmatprep.mubr.f32.mxu0 0.0
        %426 = vmatmul.mubr.f32.gmra.mrb[0].mxu0 %v359
        %v427 = vpop.f32.mrb[0].mxu0
        %v428 = vadd.f32 %v355, %v427
        %v429 = vpop.f32.mrb[0].mxu0
        %430 = vdwg.mxu0
        %v431 = vmul.f32 %v428, 0.5
        %v432 = vmul.f32 %v428, 0.70710677
        %v433 = vand.u32 2147483647, %v432
        %v434 = vmul.f32 %v433, 0.3275911
        %v435 = vadd.f32 %v434, 1.0
        %v436 = vrcp.pop %v435
        %v437 = vmul.f32 1.0, %v436
        %v438 = vmul.f32 %v437, 1.0614054
        %v439 = vadd.f32 %v438, -1.4531521
        %v440 = vmul.f32 %v439, %v437
        %v441 = vadd.f32 %v440, 1.4214138
        %v442 = vmul.f32 %v441, %v437
        %v443 = vadd.f32 %v442, -0.28449672
        %v444 = vmul.f32 %v443, %v437
        %v445 = vadd.f32 %v444, 0.2548296
        %v446 = vmul.f32 %v445, %v437
        %v447 = vsub.f32 0.0, %v433
        %v448 = vmul.f32 %v447, %v433
        %v449 = vmul.f32 %v448, 1.442695
        %v450 = vpow.pop %v449
        %v451 = vmul.f32 %v446, %v450
        %v452 = vsub.f32 1.0, %v451
        %vm453 = vcmp.lt.f32.partialorder %v432, 0.0
        %v454 = vsub.f32 0.0, %v452
        %v455 = vsel %vm453, %v454, %v452
        %v456 = vadd.f32 %v455, 1.0
        %v457 = vmul.f32 %v431, %v456
        %v458 = vld [vmem:[#allocation2] sm:$0xff]
        %v459 = vld [vmem:[%s337] sm:$0xff]
        %v460 = vld [vmem:[%s337 + $0x8] sm:$0xff]
        %v461 = vld [vmem:[%s337 + $0x10] sm:$0xff]
        %v462 = vld [vmem:[%s337 + $0x18] sm:$0xff]
        %v463 = vld [vmem:[%s337 + $0x20] sm:$0xff]
        %v464 = vld [vmem:[%s337 + $0x28] sm:$0xff]
        %v465 = vld [vmem:[%s337 + $0x30] sm:$0xff]
        %v466 = vld [vmem:[%s337 + $0x38] sm:$0xff]
        %vm467 = vcmask 523264
        %v469 = vsel %vm467, %v457, 0
        %471 = vmatprep.subr.mxu0 0.0
        %472 = vmatpush1.msra.mxu0 %v459
        %473 = vmatprep.subr.mxu0 0.0
        %474 = vmatpush1.msra.mxu0 %v460
        %475 = vmatprep.subr.mxu0 0.0
        %476 = vmatpush1.msra.mxu0 %v461
        %477 = vmatprep.subr.mxu0 0.0
        %478 = vmatpush1.msra.mxu0 %v462
        %479 = vmatprep.subr.mxu0 0.0
        %480 = vmatpush1.msra.mxu0 %v463
        %481 = vmatprep.subr.mxu0 0.0
        %482 = vmatpush1.msra.mxu0 %v464
        %483 = vmatprep.subr.mxu0 0.0
        %484 = vmatpush1.msra.mxu0 %v465
        %485 = vmatprep.subr.mxu0 0.0
        %486 = vmatpush1.msra.mxu0 %v466
        %487 = vmatprep.subr.mxu0 0.0
        %488 = vmatpush1.msra.mxu0 0.0
        %489 = vmatprep.subr.mxu0 0.0
        %490 = vmatpush1.msra.mxu0 0.0
        %491 = vmatprep.subr.mxu0 0.0
        %492 = vmatpush1.msra.mxu0 0.0
        %493 = vmatprep.subr.mxu0 0.0
        %494 = vmatpush1.msra.mxu0 0.0
        %495 = vmatprep.subr.mxu0 0.0
        %496 = vmatpush1.msra.mxu0 0.0
        %497 = vmatprep.subr.mxu0 0.0
        %498 = vmatpush1.msra.mxu0 0.0
        %499 = vmatprep.subr.mxu0 0.0
        %500 = vmatpush1.msra.mxu0 0.0
        %501 = vmatprep.subr.mxu0 0.0
        %502 = vmatpush1.msra.mxu0 0.0
        %503 = vmatprep.subr.mxu0 0.0
        %504 = vmatpush1.msra.mxu0 0.0
        %505 = vmatprep.subr.mxu0 0.0
        %506 = vmatpush1.msra.mxu0 0.0
        %507 = vmatprep.subr.mxu0 0.0
        %508 = vmatpush1.msra.mxu0 0.0
        %509 = vmatprep.subr.mxu0 0.0
        %510 = vmatpush1.msra.mxu0 0.0
        %511 = vmatprep.subr.mxu0 0.0
        %512 = vmatpush1.msra.mxu0 0.0
        %513 = vmatprep.subr.mxu0 0.0
        %514 = vmatpush1.msra.mxu0 0.0
        %515 = vmatprep.subr.mxu0 0.0
        %516 = vmatpush1.msra.mxu0 0.0
        %517 = vmatprep.subr.mxu0 0.0
        %518 = vmatpush1.msra.mxu0 0.0
        %519 = vmatprep.subr.mxu0 0.0
        %520 = vmatpush1.msra.mxu0 0.0
        %521 = vmatprep.subr.mxu0 0.0
        %522 = vmatpush1.msra.mxu0 0.0
        %523 = vmatprep.subr.mxu0 0.0
        %524 = vmatpush1.msra.mxu0 0.0
        %525 = vmatprep.subr.mxu0 0.0
        %526 = vmatpush1.msra.mxu0 0.0
        %527 = vmatprep.subr.mxu0 0.0
        %528 = vmatpush1.msra.mxu0 0.0
        %529 = vmatprep.subr.mxu0 0.0
        %530 = vmatpush1.msra.mxu0 0.0
        %531 = vmatprep.subr.mxu0 0.0
        %532 = vmatpush1.msra.mxu0 0.0
        %533 = vmatprep.subr.mxu0 0.0
        %534 = vmatpush1.msra.mxu0 0.0
        %535 = vmatprep.mubr.f32.mxu0 0.0
        %536 = vmatmul.mubr.f32.gmra.mrb[0].mxu0 %v469
        %v537 = vpop.f32.mrb[0].mxu0
        %v538 = vadd.f32 0.0, %v537
        %v539 = vpop.f32.mrb[0].mxu0
        %540 = vdwg.mxu0
        %v541 = vadd.f32 %v458, %v538
        %542 = vst.msk [vmem:[#allocation2] sm:$0xff] %vm357, %v541
        // Predicated region
        $region53: #{tpu_custom_call.1} parent=47 // pred_check
          %p543 = pneg %p339
        $region54: #{tpu_custom_call.1} parent=47 // pred_check_branch
          %545 = sbr.rel (%p543) target = $region56
        $region55: #{tpu_custom_call.1} parent=47 // pred_region
          %v546 = vld [vmem:[#allocation2] sm:$0xff]
          %v547 = vadd.f32 %v345, %v546
          %v548 = vld [vmem:[%s4] sm:$0x1]
          %v550 = vlaneseq
          %v551 = vshrl.u32 %v550, 7
          %v552 = vsub.s32 0, %v551
          %v553 = vrot.slane %v548, %v552
          %v555 = vadd.f32 %v547, %v553
          %v556 = vsel %vm357, %v555, 0.0
          %557 = vadd.xlane.f32.xlu0 %v556
          %v558 = vpop.xlane.xlu0 %557
          %v559 = vrcp.pop 32.0
          %v560 = vmul.f32 %v558, %v559
          %v561 = vsub.f32 %v555, %v560
          %v562 = vmul.f32 %v561, %v561
          %v563 = vsel %vm357, %v562, 0.0
          %564 = vadd.xlane.f32.xlu0 %v563
          %v565 = vpop.xlane.xlu0 %564
          %v566 = vmul.f32 %v565, 0.032258064
          %v567 = vrsqrt.pop %v566
          %v568 = vmul.f32 %v566, %v567
          %vm569 = vcmp.eq.f32.partialorder %v566, inf
          %v570 = vsel %vm569, %v566, %v568
          %vm571 = vcmp.eq.f32.partialorder %v566, 0.0
          %v572 = vand.u32 %v566, 2147483648
          %v573 = vsel %vm571, %v572, %v570
          %v574 = vmax.f32 %v573, 1e-06
          %v575 = vrcp.pop %v574
          %v576 = vmul.f32 1.0, %v575
          %v577 = vmul.f32 %v561, %v576
          %v578 = vld [vmem:[%s5] sm:$0x1]
          %v580 = vlaneseq
          %v581 = vshrl.u32 %v580, 7
          %v582 = vsub.s32 0, %v581
          %v583 = vrot.slane %v578, %v582
          %v585 = vmul.f32 %v577, %v583
          %v586 = vld [vmem:[%s6] sm:$0x1]
          %v588 = vlaneseq
          %v589 = vshrl.u32 %v588, 7
          %v590 = vsub.s32 0, %v589
          %v591 = vrot.slane %v586, %v590
          %v593 = vadd.f32 %v585, %v591
          %594 = vst.msk [vmem:[%s321] sm:$0xff] %vm357, %v593
        $region56: #{tpu_custom_call.1} parent=47 // pred_fallthru
          _
        %s595 = sand.u32 %s208, 1
        %s596 = scalar_lea.sflag [#allocation4], %s595
        %s597 = sand.u32 %s208, 1
        %s598 = smul.addr %s597, 8
        %s599 = scalar_lea.vmem [#allocation3], %s598
        // Predicated region
        $region57: #{tpu_custom_call.1} parent=47 // pred_check
          %p600 = pneg %p218
        $region58: #{tpu_custom_call.1} parent=47 // pred_check_branch
          %602 = sbr.rel (%p600) target = $region60
        $region59: #{tpu_custom_call.1} parent=47 // pred_region
          %s604 = ssub.s32 128, 128
          %605 = vsyncadd %s596, %s604
          %s606 = smul.addr %s25, 128
          %s607 = scalar_lea.hbm %s7, %s606
          %s609 = sshll.u32 %s599, 4
          %s610 = int_to_ptr.vmem [resolvable:$true] %s609
          %612 = dma.vmem_to_hbm [thread:$0]  %s610, 128, %s607, %s596
        $region60: #{tpu_custom_call.1} parent=47 // pred_fallthru
          _
      $region48: #{tpu_custom_call.1} parent=5 // pred_fallthru
        _
      %p613 = scmp.le.s32.totalorder 2, %s16
      // Predicated region
      $region61: #{tpu_custom_call.1} parent=5 // pred_check
        %p614 = pneg %p613
      $region62: #{tpu_custom_call.1} parent=5 // pred_check_branch
        %616 = sbr.rel (%p614) target = $region64
      $region63: #{tpu_custom_call.1} parent=5 // pred_region
        %s617 = ssub.s32 %s16, 2
        // Predicated region
        $region65: #{tpu_custom_call.1} parent=63 // pred_check
          %p618 = pneg %p224
        $region66: #{tpu_custom_call.1} parent=63 // pred_check_branch
          %620 = sbr.rel (%p618) target = $region68
        $region67: #{tpu_custom_call.1} parent=63 // pred_region
          %s621 = sand.u32 %s209, 1
          %s622 = scalar_lea.sflag [#allocation4], %s621
          %s623 = sand.u32 %s209, 1
          %s624 = smul.addr %s623, 8
          %s625 = scalar_lea.vmem [#allocation3], %s624
          %626 = dma.done %s622, 128
        $region68: #{tpu_custom_call.1} parent=63 // pred_fallthru
          _
      $region64: #{tpu_custom_call.1} parent=5 // pred_fallthru
        _
    $region6: #{tpu_custom_call.1} parent=1 // loop_footer
      %s20 = sadd.s32 1, %s16
    $region7: #{tpu_custom_call.1} parent=1 // loop_footer_branch
      %15 = sbr.rel target = $region3
    $region8: #{tpu_custom_call.1} parent=1 // loop_exit
      _
    %627 = vsyncpa [#allocation4], 1
    %s628 = scalar_lea.sflag [#allocation4], 1
    %629 = vsyncpa %s628, 1

</llo_original>
